<compile_context>
chip_gen: v7x
topology: tpu7x:2x2x1
jax: 0.10.0
libtpu: 0.0.40
codegen_flags: <defaults>
</compile_context>

<pallas_src>
import functools

import jax
import jax.numpy as jnp
from jax.experimental import pallas as pl
from jax.experimental.pallas import tpu as pltpu


_LANES = 512          # lane width of the staged 2-D view (multiple of 128 and of 4)
_SUBLANES = 8
_MAX_TILE_ROWS = 256  # 256 x 512 x 4 B = 512 KiB per array per grid step


def _yolo_decode_kernel(bb_ref, pb_ref, out_ref, *, stride):
    """Decode one (tile_rows, _LANES) tile.

    Lanes hold boxes interleaved as [x1, y1, x2, y2 | x1, y1, x2, y2 | ...]
    (same memory order as the original (B, N, 4) arrays).  The paired value of
    each lane sits 2 lanes to the right, so one static lane rotation (XLU slot,
    off the VPU/DMA critical path) aligns x2,y2 (resp. tw,th) under x1,y1
    (resp. tx,ty).  All quantities below are only *valid* at lane positions
    p = 0,1 (mod 4); the final select/shift rebuilds the interleaved output.
    """
    bb = bb_ref[...]
    pb = pb_ref[...]
    n_lanes = bb.shape[-1]

    # result[i] = x[(i + 2) % n]  ->  bring x2,y2 / tw,th under x1,y1 / tx,ty
    bb_s = pltpu.roll(bb, shift=n_lanes - 2, axis=1)
    pb_s = pltpu.roll(pb, shift=n_lanes - 2, axis=1)

    center = (bb + bb_s) * 0.5                       # xc, yc        (p = 0,1)
    size = bb_s - bb                                 # w,  h         (p = 0,1)
    center_pred = (pb - 0.5) * stride + center       # xc', yc'      (p = 0,1)
    half_size_pred = jnp.exp(pb_s) * size * 0.5      # w'/2, h'/2    (p = 0,1)

    lo = center_pred - half_size_pred                # out x1, y1    (p = 0,1)
    hi = center_pred + half_size_pred                # out x2, y2    (p = 0,1)
    hi_s = pltpu.roll(hi, shift=2, axis=1)           # move to p = 2,3

    lane = jax.lax.broadcasted_iota(jnp.int32, bb.shape, 1)
    # Single dense full-tile store (unmasked vst, lane-dense output slab).
    out_ref[...] = jnp.where((lane & 3) < 2, lo, hi_s)


def yolo_decode(bboxes, pred_bboxes, stride):
    """Pallas implementation of yolodecoder_batched.

    bboxes:      (B, N, 4) float32 -- prior/anchor boxes (x1, y1, x2, y2)
    pred_bboxes: (B, N, 4) float32 -- raw YOLO deltas (tx, ty, tw, th)
    stride:      python float / int -- feature-map stride (compile-time const)
    returns:     (B, N, 4) float32 decoded boxes
    """
    B, N, C = bboxes.shape
    assert C == 4 and pred_bboxes.shape == bboxes.shape
    stride = float(stride)  # baked into the kernel as a closure constant

    m = B * N * 4
    rows = -(-m // _LANES)                           # ceil(m / LANES)
    rows8 = -(-rows // _SUBLANES) * _SUBLANES        # round up to sublane mult.

    if rows8 > _MAX_TILE_ROWS:
        tile_rows = _MAX_TILE_ROWS
    elif rows8 % (2 * _SUBLANES) == 0 and rows8 >= 2 * _SUBLANES:
        tile_rows = rows8 // 2                       # >=2 grid steps (v7x: 2 TCs)
    else:
        tile_rows = rows8
    rows_padded = -(-rows8 // tile_rows) * tile_rows
    m_padded = rows_padded * _LANES

    def _stage(x):
        # Pure reshape of a contiguous row-major array: free (no HBM pass).
        flat = jnp.reshape(x.astype(jnp.float32), (m,))
        if m_padded != m:
            flat = jnp.pad(flat, (0, m_padded - m))  # tail handling, no assert
        return jnp.reshape(flat, (rows_padded, _LANES))

    bb2 = _stage(bboxes)
    pb2 = _stage(pred_bboxes)

    spec = pl.BlockSpec((tile_rows, _LANES), lambda r: (r, 0))

    out2 = pl.pallas_call(
        functools.partial(_yolo_decode_kernel, stride=stride),
        out_shape=jax.ShapeDtypeStruct((rows_padded, _LANES), jnp.float32),
        grid_spec=pltpu.PrefetchScalarGridSpec(
            num_scalar_prefetch=0,
            grid=(rows_padded // tile_rows,),
            in_specs=[spec, spec],
            out_specs=spec,
        ),
        compiler_params=pltpu.CompilerParams(
            dimension_semantics=("parallel",),
        ),
    )(bb2, pb2)

    flat_out = jnp.reshape(out2, (m_padded,))
    if m_padded != m:
        flat_out = flat_out[:m]
    return jnp.reshape(flat_out, (B, N, 4))


def _yolo_decode_ref(bboxes, pred_bboxes, stride):
    x_center = (bboxes[..., 0] + bboxes[..., 2]) * 0.5
    y_center = (bboxes[..., 1] + bboxes[..., 3]) * 0.5
    w = bboxes[..., 2] - bboxes[..., 0]
    h = bboxes[..., 3] - bboxes[..., 1]
    x_center_pred = (pred_bboxes[..., 0] - 0.5) * stride + x_center
    y_center_pred = (pred_bboxes[..., 1] - 0.5) * stride + y_center
    w_pred = jnp.exp(pred_bboxes[..., 2]) * w
    h_pred = jnp.exp(pred_bboxes[..., 3]) * h
    return jnp.stack(
        (
            x_center_pred - w_pred / 2,
            y_center_pred - h_pred / 2,
            x_center_pred + w_pred / 2,
            y_center_pred + h_pred / 2,
        ),
        axis=-1,
    )


class YOLOBBoxCoderWrapper:
    """JAX/Pallas counterpart of mmdet2trt's YOLOBBoxCoderWraper.

    The original module has no parameters; its forward() is a stub upstream,
    and the actual compute lives in decode().
    """

    def __init__(self):
        pass

    def forward(self, cls_scores, bbox_preds, anchors, min_num_bboxes,
                num_classes, use_sigmoid_cls, input_x=None):
        # TODO(synk): original forward() is `pass` upstream; nothing to implement.
        return None

    def decode(self, bboxes, pred_bboxes, stride):
        return yolo_decode(bboxes, pred_bboxes, stride)


if __name__ == "__main__":
    key = jax.random.PRNGKey(0)
    k1, k2, k3 = jax.random.split(key, 3)

    coder = YOLOBBoxCoderWrapper()
    stride = 16.0

    def make_inputs(B, N):
        centers = jax.random.uniform(k1, (B, N, 2), jnp.float32, 0.0, 256.0)
        sizes = jax.random.uniform(k2, (B, N, 2), jnp.float32, 4.0, 64.0)
        bboxes = jnp.concatenate(
            [centers - sizes * 0.5, centers + sizes * 0.5], axis=-1)
        pred_bboxes = jax.random.normal(k3, (B, N, 4), jnp.float32) * 0.5
        return bboxes, pred_bboxes

    # Aligned case (copy-free staging path).
    bboxes, pred_bboxes = make_inputs(2, 512)
    out = jax.block_until_ready(coder.decode(bboxes, pred_bboxes, stride))
    ref = _yolo_decode_ref(bboxes, pred_bboxes, stride)
    assert out.shape == (2, 512, 4)
    assert jnp.allclose(out, ref, atol=1e-4, rtol=1e-4)

    # Ragged case (tail handled via pad + slice, no divisibility assert).
    bboxes_r, pred_bboxes_r = make_inputs(2, 100)
    out_r = jax.block_until_ready(coder.decode(bboxes_r, pred_bboxes_r, stride))
    ref_r = _yolo_decode_ref(bboxes_r, pred_bboxes_r, stride)
    assert out_r.shape == (2, 100, 4)
    assert jnp.allclose(out_r, ref_r, atol=1e-4, rtol=1e-4)

    print("KERNEL_OK")
</pallas_src>

<mosaic_0001>
module attributes {stable_mosaic.version = 11 : i64} {
  func.func @_yolo_decode_kernel(%arg0: i32, %arg1: memref<8x512xf32, #tpu.memory_space<vmem>>, %arg2: memref<8x512xf32, #tpu.memory_space<vmem>>, %arg3: memref<8x512xf32, #tpu.memory_space<vmem>>) attributes {dimension_semantics = [#tpu.dimension_semantics<parallel>], iteration_bounds = array<i64: 1>, scalar_prefetch = 0 : i64, scratch_operands = 0 : i64, tpu.core_type = #tpu.core_type<tc>, window_params = [{transform_indices = @transform_0, window_bounds = array<i64: 8, 512>}, {transform_indices = @transform_1, window_bounds = array<i64: 8, 512>}, {transform_indices = @transform_2, window_bounds = array<i64: 8, 512>}]} {
    %c0 = arith.constant 0 : index
    %c0_0 = arith.constant 0 : index
    %0 = vector.load %arg1[%c0, %c0_0] : memref<8x512xf32, #tpu.memory_space<vmem>>, vector<8x512xf32>
    %c0_1 = arith.constant 0 : index
    %c0_2 = arith.constant 0 : index
    %1 = vector.load %arg2[%c0_1, %c0_2] : memref<8x512xf32, #tpu.memory_space<vmem>>, vector<8x512xf32>
    %c510_i32 = arith.constant 510 : i32
    %2 = tpu.dynamic_rotate %0 by %c510_i32 dim 1 : vector<8x512xf32>, i32 -> vector<8x512xf32>
    %c510_i32_3 = arith.constant 510 : i32
    %3 = tpu.dynamic_rotate %1 by %c510_i32_3 dim 1 : vector<8x512xf32>, i32 -> vector<8x512xf32>
    %4 = arith.addf %0, %2 : vector<8x512xf32>
    %cst = arith.constant 5.000000e-01 : f32
    %5 = vector.broadcast %cst : f32 to vector<8x512xf32>
    %6 = arith.mulf %4, %5 : vector<8x512xf32>
    %7 = arith.subf %2, %0 : vector<8x512xf32>
    %cst_4 = arith.constant 5.000000e-01 : f32
    %8 = vector.broadcast %cst_4 : f32 to vector<8x512xf32>
    %9 = arith.subf %1, %8 : vector<8x512xf32>
    %cst_5 = arith.constant 1.600000e+01 : f32
    %10 = vector.broadcast %cst_5 : f32 to vector<8x512xf32>
    %11 = arith.mulf %9, %10 : vector<8x512xf32>
    %12 = arith.addf %11, %6 : vector<8x512xf32>
    %13 = math.exp %3 : vector<8x512xf32>
    %14 = arith.mulf %13, %7 : vector<8x512xf32>
    %cst_6 = arith.constant 5.000000e-01 : f32
    %15 = vector.broadcast %cst_6 : f32 to vector<8x512xf32>
    %16 = arith.mulf %14, %15 : vector<8x512xf32>
    %17 = arith.subf %12, %16 : vector<8x512xf32>
    %18 = arith.addf %12, %16 : vector<8x512xf32>
    %c2_i32 = arith.constant 2 : i32
    %19 = tpu.dynamic_rotate %18 by %c2_i32 dim 1 : vector<8x512xf32>, i32 -> vector<8x512xf32>
    %20 = tpu.iota {dimensions = array<i32: 1>} : vector<8x512xi32>
    %c3_i32 = arith.constant 3 : i32
    %21 = vector.broadcast %c3_i32 : i32 to vector<8x512xi32>
    %22 = arith.andi %20, %21 : vector<8x512xi32>
    %c2_i32_7 = arith.constant 2 : i32
    %23 = vector.broadcast %c2_i32_7 : i32 to vector<8x512xi32>
    %24 = arith.cmpi slt, %22, %23 : vector<8x512xi32>
    %25 = arith.select %24, %17, %19 : vector<8x512xi1>, vector<8x512xf32>
    %c0_8 = arith.constant 0 : index
    %c0_9 = arith.constant 0 : index
    %26 = vector.load %arg3[%c0_8, %c0_9] : memref<8x512xf32, #tpu.memory_space<vmem>>, vector<8x512xf32>
    tpu.vector_store %arg3[%c0_8, %c0_9], %25 {strides = array<i32>} : memref<8x512xf32, #tpu.memory_space<vmem>>, vector<8x512xf32>,
    return
  }
  func.func @transform_0(%arg0: i32) -> (i32, i32) {
    %c0_i32 = arith.constant 0 : i32
    %c0_i32_0 = arith.constant 0 : i32
    return %arg0, %c0_i32 : i32, i32
  }
  func.func @transform_1(%arg0: i32) -> (i32, i32) {
    %c0_i32 = arith.constant 0 : i32
    %c0_i32_0 = arith.constant 0 : i32
    return %arg0, %c0_i32 : i32, i32
  }
  func.func @transform_2(%arg0: i32) -> (i32, i32) {
    %c0_i32 = arith.constant 0 : i32
    %c0_i32_0 = arith.constant 0 : i32
    return %arg0, %c0_i32 : i32, i32
  }
}

</mosaic_0001>

<llo_original>
// kernel: tpu_custom_call.1
$region0: #{tpu_custom_call.1}
  #allocation0 [shape = 'u32[]', space=smem, size = 0x4, offset = 0x4, fixed_abs, tag = 'smem constant byte address 0x4 - core index']
  #allocation1 [shape = 'u32[144,128]{1,0:T(1,128)}', space=vmem, size = 0x12000, scoped, tag = 'internal scratch']
  %s0 = inlined_call_operand.hbm [shape: f32[8,512], index: 0, kind: input, shape index: {}]
  %s1 = inlined_call_operand.hbm [shape: f32[8,512], index: 1, kind: input, shape index: {}]
  %s2 = inlined_call_operand.hbm [shape: f32[8,512], index: 2, kind: output, shape index: {}]
  %s3 = sld [smem:[#allocation0]]
  $region26: #{tpu_custom_call.1} parent=0
    _
  %s5 = ssub.s32 1, %s3
  %s6 = scalar_select 0, %s5, %s3
  $region1: #{tpu_custom_call.1} parent=0
    #allocation2 [shape = 'u8[16384]{0}', space=vmem, size = 0x4000, scoped, tag = 'input window, operand 0, single buffered']
    #allocation3 [shape = 's32[1]{0}', space=sflag, size = 0x4, scoped, tag = 'scoped memory for tpu_custom_call.1']
    #allocation4 [shape = 's32[1]{0}', space=sflag, size = 0x4, scoped, tag = 'scoped memory for tpu_custom_call.1']
    #allocation5 [shape = 'u8[16384]{0}', space=vmem, size = 0x4000, scoped, tag = 'input window, operand 1, single buffered']
    #allocation6 [shape = 's32[1]{0}', space=sflag, size = 0x4, scoped, tag = 'scoped memory for tpu_custom_call.1']
    #allocation7 [shape = 'u8[16384]{0}', space=vmem, size = 0x4000, scoped, tag = 'output window, operand 0, single buffered']
    %7 = vsyncpa [#allocation3], 0
    %8 = vsyncpa [#allocation6], 0
    %9 = vsyncpa [#allocation4], 0
    // Predicated region
    $region2: #{tpu_custom_call.1} parent=1 // pred_check
      _
    $region3: #{tpu_custom_call.1} parent=1 // pred_check_branch
      %11 = sbr.rel (0) target = $region5
    $region4: #{tpu_custom_call.1} parent=1 // pred_region
      %s13 = ssub.s32 512, 512
      %14 = vsyncadd [#allocation3], %s13
      %s16 = sshll.u32 [#allocation2], 4
      %s17 = int_to_ptr.vmem [resolvable:$true] %s16
      %19 = dma.hbm_to_vmem [thread:$0]  %s0, 512, %s17, [#allocation3]
    $region5: #{tpu_custom_call.1} parent=1 // pred_fallthru
      _
    // Predicated region
    $region6: #{tpu_custom_call.1} parent=1 // pred_check
      _
    $region7: #{tpu_custom_call.1} parent=1 // pred_check_branch
      %21 = sbr.rel (0) target = $region9
    $region8: #{tpu_custom_call.1} parent=1 // pred_region
      %s23 = ssub.s32 512, 512
      %24 = vsyncadd [#allocation6], %s23
      %s26 = sshll.u32 [#allocation5], 4
      %s27 = int_to_ptr.vmem [resolvable:$true] %s26
      %29 = dma.hbm_to_vmem [thread:$0]  %s1, 512, %s27, [#allocation6]
    $region9: #{tpu_custom_call.1} parent=1 // pred_fallthru
      _
    // Predicated region
    $region10: #{tpu_custom_call.1} parent=1 // pred_check
      _
    $region11: #{tpu_custom_call.1} parent=1 // pred_check_branch
      %31 = sbr.rel (0) target = $region13
    $region12: #{tpu_custom_call.1} parent=1 // pred_region
      %32 = dma.done [#allocation3], 512
    $region13: #{tpu_custom_call.1} parent=1 // pred_fallthru
      _
    // Predicated region
    $region14: #{tpu_custom_call.1} parent=1 // pred_check
      _
    $region15: #{tpu_custom_call.1} parent=1 // pred_check_branch
      %34 = sbr.rel (0) target = $region17
    $region16: #{tpu_custom_call.1} parent=1 // pred_region
      %35 = dma.done [#allocation6], 512
    $region17: #{tpu_custom_call.1} parent=1 // pred_fallthru
      _
    %v36 = vld [vmem:[#allocation2] sm:$0xff]
    %v37 = vld [vmem:[#allocation2 + $0x8] sm:$0xff]
    %v38 = vld [vmem:[#allocation2 + $0x10] sm:$0xff]
    %v39 = vld [vmem:[#allocation2 + $0x18] sm:$0xff]
    %v40 = vld [vmem:[#allocation5] sm:$0xff]
    %v41 = vld [vmem:[#allocation5 + $0x8] sm:$0xff]
    %v42 = vld [vmem:[#allocation5 + $0x10] sm:$0xff]
    %v43 = vld [vmem:[#allocation5 + $0x18] sm:$0xff]
    %44 = vrot.lane.b32.xlu0 %v36, 126
    %v45 = vpop.permute.xlu0 %44
    %46 = vrot.lane.b32.xlu0 %v37, 126
    %v47 = vpop.permute.xlu0 %46
    %48 = vrot.lane.b32.xlu0 %v38, 126
    %v49 = vpop.permute.xlu0 %48
    %50 = vrot.lane.b32.xlu0 %v39, 126
    %v51 = vpop.permute.xlu0 %50
    %v52 = vlaneseq
    %v53 = vand.u32 %v52, 127
    %vm54 = vcmp.lt.s32.totalorder %v53, 126
    %v55 = vsel %vm54, %v49, %v51
    %v56 = vsel %vm54, %v47, %v49
    %v57 = vsel %vm54, %v45, %v47
    %v58 = vsel %vm54, %v51, %v45
    %59 = vrot.lane.b32.xlu0 %v40, 126
    %v60 = vpop.permute.xlu0 %59
    %61 = vrot.lane.b32.xlu0 %v41, 126
    %v62 = vpop.permute.xlu0 %61
    %63 = vrot.lane.b32.xlu0 %v42, 126
    %v64 = vpop.permute.xlu0 %63
    %65 = vrot.lane.b32.xlu0 %v43, 126
    %v66 = vpop.permute.xlu0 %65
    %v67 = vsel %vm54, %v64, %v66
    %v68 = vsel %vm54, %v62, %v64
    %v69 = vsel %vm54, %v60, %v62
    %v70 = vsel %vm54, %v66, %v60
    %v71 = vadd.f32 %v36, %v57
    %v72 = vadd.f32 %v37, %v56
    %v73 = vadd.f32 %v38, %v55
    %v74 = vadd.f32 %v39, %v58
    %v75 = vmul.f32 %v71, 0.5
    %v76 = vmul.f32 %v72, 0.5
    %v77 = vmul.f32 %v73, 0.5
    %v78 = vmul.f32 %v74, 0.5
    %v79 = vsub.f32 %v57, %v36
    %v80 = vsub.f32 %v56, %v37
    %v81 = vsub.f32 %v55, %v38
    %v82 = vsub.f32 %v58, %v39
    %v83 = vsub.f32 %v40, 0.5
    %v84 = vsub.f32 %v41, 0.5
    %v85 = vsub.f32 %v42, 0.5
    %v86 = vsub.f32 %v43, 0.5
    %v87 = vmul.f32 %v83, 16.0
    %v88 = vmul.f32 %v84, 16.0
    %v89 = vmul.f32 %v85, 16.0
    %v90 = vmul.f32 %v86, 16.0
    %v91 = vadd.f32 %v87, %v75
    %v92 = vadd.f32 %v88, %v76
    %v93 = vadd.f32 %v89, %v77
    %v94 = vadd.f32 %v90, %v78
    %v95 = vmul.f32 %v69, 1.442695
    %v96 = vpow.pop %v95
    %v97 = vmul.f32 %v68, 1.442695
    %v98 = vpow.pop %v97
    %v99 = vmul.f32 %v67, 1.442695
    %v100 = vpow.pop %v99
    %v101 = vmul.f32 %v70, 1.442695
    %v102 = vpow.pop %v101
    %v103 = vmul.f32 %v96, %v79
    %v104 = vmul.f32 %v98, %v80
    %v105 = vmul.f32 %v100, %v81
    %v106 = vmul.f32 %v102, %v82
    %v107 = vmul.f32 %v103, 0.5
    %v108 = vmul.f32 %v104, 0.5
    %v109 = vmul.f32 %v105, 0.5
    %v110 = vmul.f32 %v106, 0.5
    %v111 = vsub.f32 %v91, %v107
    %v112 = vsub.f32 %v92, %v108
    %v113 = vsub.f32 %v93, %v109
    %v114 = vsub.f32 %v94, %v110
    %v115 = vadd.f32 %v91, %v107
    %v116 = vadd.f32 %v92, %v108
    %v117 = vadd.f32 %v93, %v109
    %v118 = vadd.f32 %v94, %v110
    %119 = vrot.lane.b32.xlu0 %v115, 2
    %v120 = vpop.permute.xlu0 %119
    %121 = vrot.lane.b32.xlu0 %v116, 2
    %v122 = vpop.permute.xlu0 %121
    %123 = vrot.lane.b32.xlu0 %v117, 2
    %v124 = vpop.permute.xlu0 %123
    %125 = vrot.lane.b32.xlu0 %v118, 2
    %v126 = vpop.permute.xlu0 %125
    %vm127 = vcmp.lt.s32.totalorder %v53, 2
    %v128 = vsel %vm127, %v124, %v126
    %v129 = vsel %vm127, %v122, %v124
    %v130 = vsel %vm127, %v120, %v122
    %v131 = vsel %vm127, %v126, %v120
    %v132 = vadd.s32 %v53, 128
    %v133 = vadd.s32 %v53, 256
    %v134 = vadd.s32 %v53, 384
    %v135 = vand.u32 %v53, 3
    %v136 = vand.u32 %v132, 3
    %v137 = vand.u32 %v133, 3
    %v138 = vand.u32 %v134, 3
    %vm139 = vcmp.lt.s32.totalorder %v135, 2
    %vm140 = vcmp.lt.s32.totalorder %v136, 2
    %vm141 = vcmp.lt.s32.totalorder %v137, 2
    %vm142 = vcmp.lt.s32.totalorder %v138, 2
    %v143 = vsel %vm139, %v111, %v131
    %v144 = vsel %vm140, %v112, %v130
    %v145 = vsel %vm141, %v113, %v129
    %v146 = vsel %vm142, %v114, %v128
    %147 = vst [vmem:[#allocation7] sm:$0xff] %v143
    %148 = vst [vmem:[#allocation7 + $0x8] sm:$0xff] %v144
    %149 = vst [vmem:[#allocation7 + $0x10] sm:$0xff] %v145
    %150 = vst [vmem:[#allocation7 + $0x18] sm:$0xff] %v146
    // Predicated region
    $region18: #{tpu_custom_call.1} parent=1 // pred_check
      _
    $region19: #{tpu_custom_call.1} parent=1 // pred_check_branch
      %152 = sbr.rel (0) target = $region21
    $region20: #{tpu_custom_call.1} parent=1 // pred_region
      %s154 = ssub.s32 512, 512
      %155 = vsyncadd [#allocation4], %s154
      %s157 = sshll.u32 [#allocation7], 4
      %s158 = int_to_ptr.vmem [resolvable:$true] %s157
      %160 = dma.vmem_to_hbm [thread:$0]  %s158, 512, %s2, [#allocation4]
    $region21: #{tpu_custom_call.1} parent=1 // pred_fallthru
      _
    // Predicated region
    $region22: #{tpu_custom_call.1} parent=1 // pred_check
      _
    $region23: #{tpu_custom_call.1} parent=1 // pred_check_branch
      %162 = sbr.rel (0) target = $region25
    $region24: #{tpu_custom_call.1} parent=1 // pred_region
      %163 = dma.done [#allocation4], 512
    $region25: #{tpu_custom_call.1} parent=1 // pred_fallthru
      _
    %164 = vsyncpa [#allocation3], 1
    %165 = vsyncpa [#allocation6], 1
    %166 = vsyncpa [#allocation4], 1

</llo_original>
